<compile_context>
chip_gen: v7x
topology: tpu7x:2x2x1
jax: 0.10.0
libtpu: 0.0.40
codegen_flags: <defaults>
</compile_context>

<pallas_src>
import functools

import jax
import jax.numpy as jnp
from jax import lax
from jax.experimental import pallas as pl
from jax.experimental.pallas import tpu as pltpu


def _round_up(n, m):
    return ((n + m - 1) // m) * m


def _pca_kernel(x_ref, w_ref, c_ref, o_ref, *, mxu_dtype):
    """o = x @ W + c   (both normalizations pre-folded into W, c)."""
    x = x_ref[...]
    if x.dtype != mxu_dtype:
        x = x.astype(mxu_dtype)          # per-tile cast only (hidden under DMA)
    y = jnp.dot(x, w_ref[...], preferred_element_type=jnp.float32)
    o_ref[...] = (y + c_ref[...]).astype(o_ref.dtype)


def fold_pca_params(X_mean, X_std, eigvecs, Y_mean, Y_std, *,
                    epsilon=1e-14, use_bf16_matmul=False):
    """Init-time folding of the PCA normalizations into a single (W, c):

        y = ((x - Xm)/(Xs+eps)) @ V, then (y - Ym)/(Ys+eps)
          =  x @ W + c
        W = diag(1/(Xs+eps)) @ V @ diag(1/(Ys+eps))
        c = -((Xm/(Xs+eps)) @ V + Ym) / (Ys+eps)

    Call once (module init), not per forward call.
    """
    xm = X_mean.astype(jnp.float32)
    xis = 1.0 / (X_std.astype(jnp.float32) + epsilon)
    yis = 1.0 / (Y_std.astype(jnp.float32) + epsilon)
    v = eigvecs.astype(jnp.float32)
    w = (xis[:, None] * v) * yis[None, :]                       # (D, n_modes)
    c = -(jnp.dot(xm * xis, v, precision=lax.Precision.HIGHEST)
          + Y_mean.astype(jnp.float32)) * yis                   # (n_modes,)
    if use_bf16_matmul:
        # Pre-cast once; halves resident weight VMEM and hits the native bf16
        # MXU path on v6e/v7x. Keep opt-in (quantizes to ~3 decimal digits).
        w = w.astype(jnp.bfloat16)
    return w, c.reshape(1, -1)


def _choose_row_tile(rows, D, x_itemsize, w_itemsize, n_modes, max_row_tile):
    """Adaptive row tiling: large tiles, small (preferably even, >=2) step
    count, no whole-array padding (ragged tail = OOB-masked last block)."""
    # Keep double-buffered in/out tiles + resident weights well inside the
    # smallest scoped-VMEM default across generations (v5e: 16 MiB).
    vmem_budget = 10 * 1024 * 1024
    resident = D * n_modes * w_itemsize + 128 * 4
    per_row = 2 * (D * x_itemsize + n_modes * 4)     # 2x = double buffering
    row_cap = max(8, (vmem_budget - resident) // per_row)
    max_tile = max(8, (min(int(max_row_tile), int(row_cap)) // 8) * 8)

    if rows <= 16:
        tile = _round_up(rows, 8)                    # single step, tiny input
    elif rows <= max_tile:
        tile = _round_up(pl.cdiv(rows, 2), 8)        # 2 steps: pipeline + 2 TCs
    else:
        steps = pl.cdiv(rows, max_tile)
        if steps % 2:
            steps += 1                               # even -> balanced on v7x
        tile = _round_up(pl.cdiv(rows, steps), 8)
    return tile, pl.cdiv(rows, tile)


def pca_embedding_forward(x, w, c, *, max_row_tile=1024):
    """Pallas forward of PCA_embedding.

    x: (B, C, H, W);  w: (H*W, n_modes), c: (1, n_modes) from fold_pca_params.
    Returns (B, C, n_modes) float32.
    """
    B, C, H, Wsp = x.shape
    D = H * Wsp
    rows = B * C
    Dw, n_modes = w.shape
    assert Dw == D, (Dw, D)
    c = c.reshape(1, n_modes)

    x2 = x.reshape(rows, D)                          # contiguous view, no copy
    row_tile, n_steps = _choose_row_tile(
        rows, D, x2.dtype.itemsize, w.dtype.itemsize, n_modes, max_row_tile)

    mxu_dtype = jnp.bfloat16 if w.dtype == jnp.bfloat16 else jnp.float32
    kernel = functools.partial(_pca_kernel, mxu_dtype=mxu_dtype)

    bytes_accessed = int(rows * D * x2.dtype.itemsize    # x in
                         + rows * n_modes * 4            # out
                         + D * n_modes * w.dtype.itemsize  # W (resident)
                         + n_modes * 4)                  # bias
    flops = int(2 * rows * D * n_modes + rows * n_modes)

    # TODO(synk): for very large D (W no longer comfortably VMEM-resident) add a
    # K grid axis over D marked "arbitrary" with an f32 scratch accumulator.
    out = pl.pallas_call(
        kernel,
        out_shape=jax.ShapeDtypeStruct((rows, n_modes), jnp.float32),
        grid_spec=pltpu.PrefetchScalarGridSpec(
            num_scalar_prefetch=0,
            grid=(n_steps,),
            in_specs=[
                pl.BlockSpec((row_tile, D), lambda i: (i, 0)),   # x tile (pipelined)
                pl.BlockSpec((D, n_modes), lambda i: (0, 0)),    # folded W (resident)
                pl.BlockSpec((1, n_modes), lambda i: (0, 0)),    # folded bias
            ],
            out_specs=pl.BlockSpec((row_tile, n_modes), lambda i: (i, 0)),
        ),
        compiler_params=pltpu.CompilerParams(
            dimension_semantics=("parallel",),   # shardable across v7x's 2 TCs
        ),
        cost_estimate=pl.CostEstimate(
            flops=flops, transcendentals=0, bytes_accessed=bytes_accessed),
    )(x2, w, c)

    return out.reshape(B, C, n_modes)


def _ref_forward(x, X_mean, X_std, eigvecs, Y_mean, Y_std, epsilon=1e-14):
    B, C, H, W = x.shape
    D = H * W
    xf = x.reshape(-1, D)
    xn = (xf - X_mean) / (X_std + epsilon)
    y = jnp.dot(xn, eigvecs, precision=lax.Precision.HIGHEST)
    y = (y - Y_mean) / (Y_std + epsilon)
    return y.reshape(B, C, -1)


if __name__ == "__main__":
    key = jax.random.PRNGKey(0)
    ks = jax.random.split(key, 6)

    B, C, H, W = 2, 4, 16, 16
    D = H * W
    n_modes = 16
    eps = 1e-14

    # Stand-in "fit" statistics: the torch.svd fit in __init__ is offline
    # precompute and not part of forward().
    # TODO(synk): the SVD-based eigvecs fit from __init__ is not translated; a
    # random projection matrix with consistent Y statistics stands in for it.
    n_fit = 64
    feat = jax.random.normal(ks[0], (n_fit, D), jnp.float32)
    X_mean = feat.mean(axis=0)
    X_std = feat.std(axis=0, ddof=1)                 # torch.std default: unbiased
    eigvecs = jax.random.normal(ks[1], (D, n_modes), jnp.float32) / jnp.sqrt(D)
    Xn = (feat - X_mean) / (X_std + eps)
    Yfit = jnp.dot(Xn, eigvecs, precision=lax.Precision.HIGHEST)
    Y_mean = Yfit.mean(axis=0)
    Y_std = Yfit.std(axis=0, ddof=1)

    # ---- init-time parameter folding (done once, reused across calls) -------
    w_f32, c_f32 = fold_pca_params(X_mean, X_std, eigvecs, Y_mean, Y_std,
                                   epsilon=eps)
    w_bf16, c_bf16 = fold_pca_params(X_mean, X_std, eigvecs, Y_mean, Y_std,
                                     epsilon=eps, use_bf16_matmul=True)

    # --- small case (shapes implied by the module's forward) -----------------
    x = jax.random.normal(ks[2], (B, C, H, W), jnp.float32)
    out = jax.block_until_ready(pca_embedding_forward(x, w_f32, c_f32))
    ref = _ref_forward(x, X_mean, X_std, eigvecs, Y_mean, Y_std, epsilon=eps)
    assert out.shape == (B, C, n_modes)
    assert jnp.allclose(out, ref, atol=5e-4, rtol=5e-4), "small-case mismatch"

    # --- larger ragged case: rows = 8*131 = 1048 -> tile 528 -> grid of 2 with
    #     a partial (OOB-masked) last block; exercises pipelining + tail path. -
    B2, C2 = 8, 131
    x_big = jax.random.normal(ks[3], (B2, C2, H, W), jnp.float32)
    out_big = jax.block_until_ready(pca_embedding_forward(x_big, w_f32, c_f32))
    ref_big = _ref_forward(x_big, X_mean, X_std, eigvecs, Y_mean, Y_std,
                           epsilon=eps)
    assert out_big.shape == (B2, C2, n_modes)
    assert jnp.allclose(out_big, ref_big, atol=5e-4, rtol=5e-4), "big-case mismatch"

    # --- optional bf16-weight path (pre-cast once; f32 accumulation) ---------
    out_bf16 = jax.block_until_ready(
        pca_embedding_forward(x_big, w_bf16, c_bf16))
    assert jnp.allclose(out_bf16, ref_big, atol=5e-2, rtol=5e-2), "bf16-case mismatch"

    print("KERNEL_OK")
</pallas_src>

<mosaic_0001>
module attributes {stable_mosaic.version = 11 : i64} {
  func.func @_pca_kernel(%arg0: i32, %arg1: memref<8x256xf32, #tpu.memory_space<vmem>>, %arg2: memref<256x16xf32, #tpu.memory_space<vmem>>, %arg3: memref<1x16xf32, #tpu.memory_space<vmem>>, %arg4: memref<8x16xf32, #tpu.memory_space<vmem>>) attributes {dimension_semantics = [#tpu.dimension_semantics<parallel>], iteration_bounds = array<i64: 1>, scalar_prefetch = 0 : i64, scratch_operands = 0 : i64, tpu.core_type = #tpu.core_type<tc>, window_params = [{transform_indices = @transform_0, window_bounds = array<i64: 8, 256>}, {pipeline_mode = #tpu.pipeline_mode<synchronous>, transform_indices = @transform_1, window_bounds = array<i64: 256, 16>}, {pipeline_mode = #tpu.pipeline_mode<synchronous>, transform_indices = @transform_2, window_bounds = array<i64: 1, 16>}, {transform_indices = @transform_3, window_bounds = array<i64: 8, 16>}]} {
    %c0 = arith.constant 0 : index
    %c0_0 = arith.constant 0 : index
    %0 = vector.load %arg1[%c0, %c0_0] : memref<8x256xf32, #tpu.memory_space<vmem>>, vector<8x256xf32>
    %c0_1 = arith.constant 0 : index
    %c0_2 = arith.constant 0 : index
    %1 = vector.load %arg2[%c0_1, %c0_2] : memref<256x16xf32, #tpu.memory_space<vmem>>, vector<256x16xf32>
    %cst = arith.constant dense<0.000000e+00> : vector<8x16xf32>
    %2 = tpu.matmul %0, %1, %cst {dimension_numbers = #tpu.dot_dimension_numbers<[1], [0], [0], [1], [0, 0, 1, 1], [], []>} : vector<8x256xf32>, vector<256x16xf32>, vector<8x16xf32> -> vector<8x16xf32>
    %c0_3 = arith.constant 0 : index
    %c0_4 = arith.constant 0 : index
    %3 = vector.load %arg3[%c0_3, %c0_4] : memref<1x16xf32, #tpu.memory_space<vmem>>, vector<1x16xf32>
    %4 = vector.broadcast %3 : vector<1x16xf32> to vector<8x16xf32>
    %5 = arith.addf %2, %4 : vector<8x16xf32>
    %c0_5 = arith.constant 0 : index
    %c0_6 = arith.constant 0 : index
    %6 = vector.load %arg4[%c0_5, %c0_6] : memref<8x16xf32, #tpu.memory_space<vmem>>, vector<8x16xf32>
    tpu.vector_store %arg4[%c0_5, %c0_6], %5 {strides = array<i32>} : memref<8x16xf32, #tpu.memory_space<vmem>>, vector<8x16xf32>,
    return
  }
  func.func @transform_0(%arg0: i32) -> (i32, i32) {
    %c0_i32 = arith.constant 0 : i32
    %c0_i32_0 = arith.constant 0 : i32
    return %arg0, %c0_i32 : i32, i32
  }
  func.func @transform_1(%arg0: i32) -> (i32, i32) {
    %c0_i32 = arith.constant 0 : i32
    %c0_i32_0 = arith.constant 0 : i32
    %c0_i32_1 = arith.constant 0 : i32
    return %c0_i32, %c0_i32_0 : i32, i32
  }
  func.func @transform_2(%arg0: i32) -> (i32, i32) {
    %c0_i32 = arith.constant 0 : i32
    %c0_i32_0 = arith.constant 0 : i32
    %c0_i32_1 = arith.constant 0 : i32
    return %c0_i32, %c0_i32_0 : i32, i32
  }
  func.func @transform_3(%arg0: i32) -> (i32, i32) {
    %c0_i32 = arith.constant 0 : i32
    %c0_i32_0 = arith.constant 0 : i32
    return %arg0, %c0_i32 : i32, i32
  }
}

</mosaic_0001>

<llo_original>
// kernel: tpu_custom_call.1
$region0: #{tpu_custom_call.1}
  #allocation0 [shape = 'u32[]', space=smem, size = 0x4, offset = 0x4, fixed_abs, tag = 'smem constant byte address 0x4 - core index']
  #allocation1 [shape = 'u32[144,128]{1,0:T(1,128)}', space=vmem, size = 0x12000, scoped, tag = 'internal scratch']
  %s0 = inlined_call_operand.vmem [shape: f32[8,256], index: 0, kind: input, shape index: {}]
  %s1 = inlined_call_operand.vmem [shape: f32[256,16], index: 1, kind: input, shape index: {}]
  %s2 = inlined_call_operand.vmem [shape: f32[1,16], index: 2, kind: input, shape index: {}]
  %s3 = inlined_call_operand.hbm [shape: f32[8,16], index: 3, kind: output, shape index: {}]
  %s4 = sld [smem:[#allocation0]]
  $region22: #{tpu_custom_call.1} parent=0
    _
  %s6 = ssub.s32 1, %s4
  %s7 = scalar_select 0, %s6, %s4
  $region1: #{tpu_custom_call.1} parent=0
    #allocation2 [shape = 'u8[4096]{0}', space=vmem, size = 0x1000, scoped, tag = 'output window, operand 0, single buffered']
    #allocation3 [shape = 's32[1]{0}', space=sflag, size = 0x4, scoped, tag = 'scoped memory for tpu_custom_call.1']
    %8 = vsyncpa [#allocation3], 0
    // Predicated region
    $region2: #{tpu_custom_call.1} parent=1 // pred_check
      _
    $region3: #{tpu_custom_call.1} parent=1 // pred_check_branch
      %10 = sbr.rel (0) target = $region5
    $region4: #{tpu_custom_call.1} parent=1 // pred_region
      _
    $region5: #{tpu_custom_call.1} parent=1 // pred_fallthru
      _
    // Predicated region
    $region6: #{tpu_custom_call.1} parent=1 // pred_check
      _
    $region7: #{tpu_custom_call.1} parent=1 // pred_check_branch
      %12 = sbr.rel (0) target = $region9
    $region8: #{tpu_custom_call.1} parent=1 // pred_region
      _
    $region9: #{tpu_custom_call.1} parent=1 // pred_fallthru
      _
    // Predicated region
    $region10: #{tpu_custom_call.1} parent=1 // pred_check
      _
    $region11: #{tpu_custom_call.1} parent=1 // pred_check_branch
      %14 = sbr.rel (0) target = $region13
    $region12: #{tpu_custom_call.1} parent=1 // pred_region
      _
    $region13: #{tpu_custom_call.1} parent=1 // pred_fallthru
      _
    %v15 = vld [vmem:[%s0] sm:$0xff]
    %v16 = vld [vmem:[%s0 + $0x8] sm:$0xff]
    %v17 = vld [vmem:[%s1] sm:$0xff]
    %v18 = vld [vmem:[%s1 + $0x8] sm:$0xff]
    %v19 = vld [vmem:[%s1 + $0x10] sm:$0xff]
    %v20 = vld [vmem:[%s1 + $0x18] sm:$0xff]
    %v21 = vld [vmem:[%s1 + $0x20] sm:$0xff]
    %v22 = vld [vmem:[%s1 + $0x28] sm:$0xff]
    %v23 = vld [vmem:[%s1 + $0x30] sm:$0xff]
    %v24 = vld [vmem:[%s1 + $0x38] sm:$0xff]
    %v25 = vld [vmem:[%s1 + $0x40] sm:$0xff]
    %v26 = vld [vmem:[%s1 + $0x48] sm:$0xff]
    %v27 = vld [vmem:[%s1 + $0x50] sm:$0xff]
    %v28 = vld [vmem:[%s1 + $0x58] sm:$0xff]
    %v29 = vld [vmem:[%s1 + $0x60] sm:$0xff]
    %v30 = vld [vmem:[%s1 + $0x68] sm:$0xff]
    %v31 = vld [vmem:[%s1 + $0x70] sm:$0xff]
    %v32 = vld [vmem:[%s1 + $0x78] sm:$0xff]
    %v33 = vld [vmem:[%s1 + $0x80] sm:$0xff]
    %v34 = vld [vmem:[%s1 + $0x88] sm:$0xff]
    %v35 = vld [vmem:[%s1 + $0x90] sm:$0xff]
    %v36 = vld [vmem:[%s1 + $0x98] sm:$0xff]
    %v37 = vld [vmem:[%s1 + $0xa0] sm:$0xff]
    %v38 = vld [vmem:[%s1 + $0xa8] sm:$0xff]
    %v39 = vld [vmem:[%s1 + $0xb0] sm:$0xff]
    %v40 = vld [vmem:[%s1 + $0xb8] sm:$0xff]
    %v41 = vld [vmem:[%s1 + $0xc0] sm:$0xff]
    %v42 = vld [vmem:[%s1 + $0xc8] sm:$0xff]
    %v43 = vld [vmem:[%s1 + $0xd0] sm:$0xff]
    %v44 = vld [vmem:[%s1 + $0xd8] sm:$0xff]
    %v45 = vld [vmem:[%s1 + $0xe0] sm:$0xff]
    %v46 = vld [vmem:[%s1 + $0xe8] sm:$0xff]
    %v47 = vld [vmem:[%s1 + $0xf0] sm:$0xff]
    %v48 = vld [vmem:[%s1 + $0xf8] sm:$0xff]
    %v49 = vld [vmem:[%s2] sm:$0x1]
    %v51 = vlaneseq
    %v52 = vshrl.u32 %v51, 7
    %v53 = vsub.s32 0, %v52
    %v54 = vrot.slane %v49, %v53
    %56 = vmatprep.subr.mxu0 0.0
    %57 = vmatpush1.msra.mxu0 %v17
    %58 = vmatprep.subr.mxu0 0.0
    %59 = vmatpush1.msra.mxu0 %v18
    %60 = vmatprep.subr.mxu0 0.0
    %61 = vmatpush1.msra.mxu0 %v19
    %62 = vmatprep.subr.mxu0 0.0
    %63 = vmatpush1.msra.mxu0 %v20
    %64 = vmatprep.subr.mxu0 0.0
    %65 = vmatpush1.msra.mxu0 %v21
    %66 = vmatprep.subr.mxu0 0.0
    %67 = vmatpush1.msra.mxu0 %v22
    %68 = vmatprep.subr.mxu0 0.0
    %69 = vmatpush1.msra.mxu0 %v23
    %70 = vmatprep.subr.mxu0 0.0
    %71 = vmatpush1.msra.mxu0 %v24
    %72 = vmatprep.subr.mxu0 0.0
    %73 = vmatpush1.msra.mxu0 %v25
    %74 = vmatprep.subr.mxu0 0.0
    %75 = vmatpush1.msra.mxu0 %v26
    %76 = vmatprep.subr.mxu0 0.0
    %77 = vmatpush1.msra.mxu0 %v27
    %78 = vmatprep.subr.mxu0 0.0
    %79 = vmatpush1.msra.mxu0 %v28
    %80 = vmatprep.subr.mxu0 0.0
    %81 = vmatpush1.msra.mxu0 %v29
    %82 = vmatprep.subr.mxu0 0.0
    %83 = vmatpush1.msra.mxu0 %v30
    %84 = vmatprep.subr.mxu0 0.0
    %85 = vmatpush1.msra.mxu0 %v31
    %86 = vmatprep.subr.mxu0 0.0
    %87 = vmatpush1.msra.mxu0 %v32
    %88 = vmatprep.subr.mxu0 0.0
    %89 = vmatpush1.msra.mxu0 %v33
    %90 = vmatprep.subr.mxu0 0.0
    %91 = vmatpush1.msra.mxu0 %v34
    %92 = vmatprep.subr.mxu0 0.0
    %93 = vmatpush1.msra.mxu0 %v35
    %94 = vmatprep.subr.mxu0 0.0
    %95 = vmatpush1.msra.mxu0 %v36
    %96 = vmatprep.subr.mxu0 0.0
    %97 = vmatpush1.msra.mxu0 %v37
    %98 = vmatprep.subr.mxu0 0.0
    %99 = vmatpush1.msra.mxu0 %v38
    %100 = vmatprep.subr.mxu0 0.0
    %101 = vmatpush1.msra.mxu0 %v39
    %102 = vmatprep.subr.mxu0 0.0
    %103 = vmatpush1.msra.mxu0 %v40
    %104 = vmatprep.subr.mxu0 0.0
    %105 = vmatpush1.msra.mxu0 %v41
    %106 = vmatprep.subr.mxu0 0.0
    %107 = vmatpush1.msra.mxu0 %v42
    %108 = vmatprep.subr.mxu0 0.0
    %109 = vmatpush1.msra.mxu0 %v43
    %110 = vmatprep.subr.mxu0 0.0
    %111 = vmatpush1.msra.mxu0 %v44
    %112 = vmatprep.subr.mxu0 0.0
    %113 = vmatpush1.msra.mxu0 %v45
    %114 = vmatprep.subr.mxu0 0.0
    %115 = vmatpush1.msra.mxu0 %v46
    %116 = vmatprep.subr.mxu0 0.0
    %117 = vmatpush1.msra.mxu0 %v47
    %118 = vmatprep.subr.mxu0 0.0
    %119 = vmatpush1.msra.mxu0 %v48
    %120 = vmatprep.mubr.f32.mxu0 %v16
    %121 = vmatmul.mubr.f32.gmra.mrb[0].mxu0 %v15
    %v122 = vpop.f32.mrb[0].mxu0
    %v123 = vadd.f32 %v54, %v122
    %v124 = vpop.f32.mrb[0].mxu0
    %125 = vdwg.mxu0
    %vm126 = vcmask 130048
    %127 = vst.msk [vmem:[#allocation2] sm:$0xff] %vm126, %v123
    // Predicated region
    $region14: #{tpu_custom_call.1} parent=1 // pred_check
      _
    $region15: #{tpu_custom_call.1} parent=1 // pred_check_branch
      %129 = sbr.rel (0) target = $region17
    $region16: #{tpu_custom_call.1} parent=1 // pred_region
      %s131 = ssub.s32 128, 128
      %132 = vsyncadd [#allocation3], %s131
      %s134 = sshll.u32 [#allocation2], 4
      %s135 = int_to_ptr.vmem [resolvable:$true] %s134
      %137 = dma.vmem_to_hbm [thread:$0]  %s135, 128, %s3, [#allocation3]
    $region17: #{tpu_custom_call.1} parent=1 // pred_fallthru
      _
    // Predicated region
    $region18: #{tpu_custom_call.1} parent=1 // pred_check
      _
    $region19: #{tpu_custom_call.1} parent=1 // pred_check_branch
      %139 = sbr.rel (0) target = $region21
    $region20: #{tpu_custom_call.1} parent=1 // pred_region
      %140 = dma.done [#allocation3], 128
    $region21: #{tpu_custom_call.1} parent=1 // pred_fallthru
      _
    %141 = vsyncpa [#allocation3], 1

</llo_original>
